<compile_context>
chip_gen: v6e
topology: v6e:2x2x1
jax: 0.10.0
libtpu: 0.0.40
codegen_flags: <defaults>
</compile_context>

<pallas_src>
import functools

import jax
import jax.numpy as jnp
from jax.experimental import pallas as pl
from jax.experimental.pallas import tpu as pltpu

_LANE = 512                       # lane-dense last dim (multiple of 128)
_MAX_BLOCK_ROWS = 2048            # (2048, 512) f32 block = 4 MiB
_SPLIT_BYTES = 2 * 1024 * 1024    # force >= 2 grid steps above this size
_VMEM_LIMIT = 48 * 1024 * 1024    # fits v5e/v6e (128 MiB phys) and leaves headroom on v7x (64 MiB)


def _cdiv(a, b):
    return -(-a // b)


def _round_up(a, b):
    return _cdiv(a, b) * b


def _choose_tiling(rows, itemsize):
    """Pick (block_rows, n_tiles) for a (rows, _LANE) array; ragged last block is OK."""
    n_tiles = _cdiv(rows, _MAX_BLOCK_ROWS)
    if n_tiles == 1 and rows * _LANE * itemsize >= _SPLIT_BYTES:
        n_tiles = 2  # keep both TensorCores / the pipeline busy for mid-sized tensors
    if n_tiles == 1:
        return rows, 1  # single full-extent block (any row count allowed)
    block_rows = _round_up(_cdiv(rows, n_tiles), 8)
    return block_rows, _cdiv(rows, block_rows)


# ---------------------------------------------------------------------------
# Pass 1: per-tile partial min/max -> one (8, 128) tile per grid step
# ---------------------------------------------------------------------------
def _minmax_kernel(x_ref, min_ref, max_ref, *, block_rows, total_rows, lane):
    x = x_ref[...].astype(jnp.float32)

    if total_rows % block_rows != 0:
        # Ragged last block: rows beyond `total_rows` hold undefined data from the
        # partial DMA -- mask them so min/max are unaffected (cheap VPU selects).
        rid = jax.lax.broadcasted_iota(jnp.int32, x.shape, 0) + pl.program_id(0) * block_rows
        valid = rid < total_rows
        x_min = jnp.where(valid, x, jnp.inf)
        x_max = jnp.where(valid, x, -jnp.inf)
    else:
        x_min = x
        x_max = x

    r = x.shape[0]
    if r % 8 == 0:
        # Sublane-preserving fold: pure VPU min/max, no cross-sublane XLU reduce.
        mn = jnp.min(x_min.reshape(r // 8, 8, lane), axis=0)
        mx = jnp.max(x_max.reshape(r // 8, 8, lane), axis=0)
    else:
        mn = jnp.broadcast_to(jnp.min(x_min, axis=0, keepdims=True), (8, lane))
        mx = jnp.broadcast_to(jnp.max(x_max, axis=0, keepdims=True), (8, lane))

    # Fold lanes (lane -> 128) with 128-aligned slices: each slice is one vreg
    # column group, so this is a handful of vector mins/maxes, no relayout.
    mn_f, mx_f = mn[:, :128], mx[:, :128]
    for g in range(1, lane // 128):
        mn_f = jnp.minimum(mn_f, mn[:, g * 128:(g + 1) * 128])
        mx_f = jnp.maximum(mx_f, mx[:, g * 128:(g + 1) * 128])
    min_ref[...] = mn_f
    max_ref[...] = mx_f


# ---------------------------------------------------------------------------
# Pass 2: elementwise (x - minV) * scale + min_tar, scalars via SMEM prefetch
# ---------------------------------------------------------------------------
def _rescale_kernel(so_ref, x_ref, o_ref, *, min_tar):
    minv = so_ref[0]
    scale = so_ref[1]
    x = x_ref[...].astype(jnp.float32)
    o_ref[...] = ((x - minv) * scale + min_tar).astype(o_ref.dtype)


def linear_transmation(img, max_tar, min_tar):
    """Pallas equivalent of the PyTorch linear_transmation.forward."""
    orig_shape = img.shape
    in_dtype = img.dtype
    # PyTorch promotes integer tensors to float via the python-float multiply.
    out_dtype = in_dtype if jnp.issubdtype(in_dtype, jnp.floating) else jnp.float32
    total = int(img.size)
    itemsize = jnp.dtype(in_dtype).itemsize
    out_itemsize = jnp.dtype(out_dtype).itemsize
    max_tar = float(max_tar)
    min_tar = float(min_tar)

    if total == 0:
        return jnp.zeros(orig_shape, out_dtype)

    x_flat = img.reshape(-1)

    if total < _LANE:
        # Tiny input: two kernel launches cost more than the op itself.
        xf = x_flat.astype(jnp.float32)
        minV, maxV = jnp.min(xf), jnp.max(xf)
        scale = (jnp.float32(max_tar) - jnp.float32(min_tar)) / (maxV - minV)
        out = ((xf - minV) * scale + jnp.float32(min_tar)).astype(out_dtype)
        return out.reshape(orig_shape)

    # Lane-dense 2D view: (rows, 512).  Free reshape when size % 512 == 0; otherwise
    # pad the tail (<512 elems) with 'edge' values so min/max are unchanged.
    # TODO(synk): the ragged-size pad + final slice each cost one extra HBM pass; a
    # fully masked 1-D epilogue could remove them, aligned sizes already hit the floor.
    rows = _cdiv(total, _LANE)
    pad = rows * _LANE - total
    if pad:
        x_flat = jnp.pad(x_flat, (0, pad), mode="edge")
    x2d = x_flat.reshape(rows, _LANE)

    block_rows, n_tiles = _choose_tiling(rows, itemsize)

    # ---- pass 1: partial min/max (parallel over tiles) ----------------------
    mm_kernel = functools.partial(
        _minmax_kernel, block_rows=block_rows, total_rows=rows, lane=_LANE)
    pmin, pmax = pl.pallas_call(
        mm_kernel,
        out_shape=(
            jax.ShapeDtypeStruct((8, n_tiles * 128), jnp.float32),
            jax.ShapeDtypeStruct((8, n_tiles * 128), jnp.float32),
        ),
        grid=(n_tiles,),
        in_specs=[pl.BlockSpec((block_rows, _LANE), lambda i: (i, 0))],
        out_specs=(
            pl.BlockSpec((8, 128), lambda i: (0, i)),
            pl.BlockSpec((8, 128), lambda i: (0, i)),
        ),
        compiler_params=pltpu.CompilerParams(
            dimension_semantics=("parallel",),
            vmem_limit_bytes=_VMEM_LIMIT),
        cost_estimate=pl.CostEstimate(
            flops=2 * total,
            transcendentals=0,
            bytes_accessed=rows * _LANE * itemsize + 2 * 8 * n_tiles * 128 * 4),
    )(x2d)

    minV = jnp.min(pmin)
    maxV = jnp.max(pmax)

    # Hoisted scalar math; kernel keeps the reference rounding order:
    #   out = (x - minV) * scale + min_tar, scale = (max_tar - min_tar)/(maxV - minV)
    # (inf/nan when maxV == minV, matching PyTorch).
    scale = (jnp.float32(max_tar) - jnp.float32(min_tar)) / (maxV - minV)
    min_scale = jnp.stack([minV, scale]).astype(jnp.float32)

    # ---- pass 2: elementwise rescale (minV/scale via scalar prefetch) -------
    rs_kernel = functools.partial(_rescale_kernel, min_tar=min_tar)
    out2d = pl.pallas_call(
        rs_kernel,
        out_shape=jax.ShapeDtypeStruct((rows, _LANE), out_dtype),
        grid_spec=pltpu.PrefetchScalarGridSpec(
            num_scalar_prefetch=1,
            grid=(n_tiles,),
            in_specs=[pl.BlockSpec((block_rows, _LANE), lambda i, so: (i, 0))],
            out_specs=pl.BlockSpec((block_rows, _LANE), lambda i, so: (i, 0)),
        ),
        compiler_params=pltpu.CompilerParams(
            dimension_semantics=("parallel",),
            vmem_limit_bytes=_VMEM_LIMIT),
        cost_estimate=pl.CostEstimate(
            flops=3 * total,
            transcendentals=0,
            bytes_accessed=rows * _LANE * (itemsize + out_itemsize)),
    )(min_scale, x2d)

    out_flat = out2d.reshape(-1)
    if pad:
        out_flat = out_flat[:total]
    return out_flat.reshape(orig_shape)


def _reference(x, max_tar, min_tar):
    xf = x.astype(jnp.float32)
    maxV, minV = xf.max(), xf.min()
    out = (xf - minV) * (max_tar - min_tar) / (maxV - minV) + min_tar
    return out.astype(x.dtype) if jnp.issubdtype(x.dtype, jnp.floating) else out


if __name__ == "__main__":
    max_tar, min_tar = 1.0, 0.0  # module __init__ args
    k1, k2, k3, k4 = jax.random.split(jax.random.PRNGKey(0), 4)

    # 1) lane-aligned NCHW image (2048 elements = 4 rows of 512): zero-copy fast path.
    x = jax.random.normal(k1, (2, 4, 16, 16), dtype=jnp.float32) * 37.0 + 5.0
    out = jax.block_until_ready(linear_transmation(x, max_tar, min_tar))
    assert out.shape == x.shape and out.dtype == x.dtype
    assert jnp.allclose(out, _reference(x, max_tar, min_tar), atol=1e-5, rtol=1e-5)

    # 2) odd element count (1155) -> exercises the tail-padding path.
    y = jax.random.normal(k2, (3, 5, 7, 11), dtype=jnp.float32) * 11.0 - 2.0
    out_y = jax.block_until_ready(linear_transmation(y, max_tar, min_tar))
    assert out_y.shape == y.shape and out_y.dtype == y.dtype
    assert jnp.allclose(out_y, _reference(y, max_tar, min_tar), atol=1e-5, rtol=1e-5)

    # 3) mid-sized tensor -> multi-tile grid with a ragged (masked) last row-block.
    z = jax.random.normal(k3, (2, 4, 260, 259), dtype=jnp.float32) * 5.0 + 100.0
    out_z = jax.block_until_ready(linear_transmation(z, max_tar, min_tar))
    assert jnp.allclose(out_z, _reference(z, max_tar, min_tar), atol=1e-5, rtol=1e-5)

    # 4) tiny tensor -> pure-jnp fallback path.
    w = jax.random.normal(k4, (2, 3, 5), dtype=jnp.float32)
    out_w = jax.block_until_ready(linear_transmation(w, max_tar, min_tar))
    assert jnp.allclose(out_w, _reference(w, max_tar, min_tar), atol=1e-5, rtol=1e-5)

    print("KERNEL_OK")
</pallas_src>

<mosaic_0001>
module attributes {stable_mosaic.version = 11 : i64} {
  func.func @_minmax_kernel(%arg0: i32, %arg1: memref<4x512xf32, #tpu.memory_space<vmem>>, %arg2: memref<8x128xf32, #tpu.memory_space<vmem>>, %arg3: memref<8x128xf32, #tpu.memory_space<vmem>>) attributes {dimension_semantics = [#tpu.dimension_semantics<parallel>], iteration_bounds = array<i64: 1>, scalar_prefetch = 0 : i64, scratch_operands = 0 : i64, tpu.core_type = #tpu.core_type<tc>, window_params = [{transform_indices = @transform_0, window_bounds = array<i64: 4, 512>}, {transform_indices = @transform_1, window_bounds = array<i64: 8, 128>}, {transform_indices = @transform_2, window_bounds = array<i64: 8, 128>}]} {
    %c0 = arith.constant 0 : index
    %c0_0 = arith.constant 0 : index
    %0 = vector.load %arg1[%c0, %c0_0] : memref<4x512xf32, #tpu.memory_space<vmem>>, vector<4x512xf32>
    %cst = arith.constant dense<0x7F800000> : vector<512xf32>
    %1 = vector.multi_reduction <minimumf>, %0, %cst [0] : vector<4x512xf32> to vector<512xf32>
    %2 = vector.shape_cast %1 : vector<512xf32> to vector<1x512xf32>
    %3 = vector.shape_cast %2 : vector<1x512xf32> to vector<1x512xf32>
    %4 = vector.broadcast %3 : vector<1x512xf32> to vector<8x512xf32>
    %cst_1 = arith.constant dense<0xFF800000> : vector<512xf32>
    %5 = vector.multi_reduction <maximumf>, %0, %cst_1 [0] : vector<4x512xf32> to vector<512xf32>
    %6 = vector.shape_cast %5 : vector<512xf32> to vector<1x512xf32>
    %7 = vector.shape_cast %6 : vector<1x512xf32> to vector<1x512xf32>
    %8 = vector.broadcast %7 : vector<1x512xf32> to vector<8x512xf32>
    %9 = vector.extract_strided_slice %4 {offsets = [0, 0], sizes = [8, 128], strides = [1, 1]} : vector<8x512xf32> to vector<8x128xf32>
    %10 = vector.extract_strided_slice %8 {offsets = [0, 0], sizes = [8, 128], strides = [1, 1]} : vector<8x512xf32> to vector<8x128xf32>
    %11 = vector.extract_strided_slice %4 {offsets = [0, 128], sizes = [8, 128], strides = [1, 1]} : vector<8x512xf32> to vector<8x128xf32>
    %12 = arith.minimumf %9, %11 : vector<8x128xf32>
    %13 = vector.extract_strided_slice %8 {offsets = [0, 128], sizes = [8, 128], strides = [1, 1]} : vector<8x512xf32> to vector<8x128xf32>
    %14 = arith.maximumf %10, %13 : vector<8x128xf32>
    %15 = vector.extract_strided_slice %4 {offsets = [0, 256], sizes = [8, 128], strides = [1, 1]} : vector<8x512xf32> to vector<8x128xf32>
    %16 = arith.minimumf %12, %15 : vector<8x128xf32>
    %17 = vector.extract_strided_slice %8 {offsets = [0, 256], sizes = [8, 128], strides = [1, 1]} : vector<8x512xf32> to vector<8x128xf32>
    %18 = arith.maximumf %14, %17 : vector<8x128xf32>
    %19 = vector.extract_strided_slice %4 {offsets = [0, 384], sizes = [8, 128], strides = [1, 1]} : vector<8x512xf32> to vector<8x128xf32>
    %20 = arith.minimumf %16, %19 : vector<8x128xf32>
    %21 = vector.extract_strided_slice %8 {offsets = [0, 384], sizes = [8, 128], strides = [1, 1]} : vector<8x512xf32> to vector<8x128xf32>
    %22 = arith.maximumf %18, %21 : vector<8x128xf32>
    %c0_2 = arith.constant 0 : index
    %c0_3 = arith.constant 0 : index
    %23 = vector.load %arg2[%c0_2, %c0_3] : memref<8x128xf32, #tpu.memory_space<vmem>>, vector<8x128xf32>
    tpu.vector_store %arg2[%c0_2, %c0_3], %20 {strides = array<i32>} : memref<8x128xf32, #tpu.memory_space<vmem>>, vector<8x128xf32>,
    %c0_4 = arith.constant 0 : index
    %c0_5 = arith.constant 0 : index
    %24 = vector.load %arg3[%c0_4, %c0_5] : memref<8x128xf32, #tpu.memory_space<vmem>>, vector<8x128xf32>
    tpu.vector_store %arg3[%c0_4, %c0_5], %22 {strides = array<i32>} : memref<8x128xf32, #tpu.memory_space<vmem>>, vector<8x128xf32>,
    return
  }
  func.func @transform_0(%arg0: i32) -> (i32, i32) {
    %c0_i32 = arith.constant 0 : i32
    %c0_i32_0 = arith.constant 0 : i32
    return %arg0, %c0_i32 : i32, i32
  }
  func.func @transform_1(%arg0: i32) -> (i32, i32) {
    %c0_i32 = arith.constant 0 : i32
    %c0_i32_0 = arith.constant 0 : i32
    return %c0_i32, %arg0 : i32, i32
  }
  func.func @transform_2(%arg0: i32) -> (i32, i32) {
    %c0_i32 = arith.constant 0 : i32
    %c0_i32_0 = arith.constant 0 : i32
    return %c0_i32, %arg0 : i32, i32
  }
}

</mosaic_0001>

<llo_original>
// kernel: tpu_custom_call.1
$region0: #{tpu_custom_call.1}
  #allocation0 [shape = 'u32[]', space=smem, size = 0x4, offset = 0x4, fixed_abs, tag = 'smem constant byte address 0x4 - core index']
  #allocation1 [shape = 'u32[144,128]{1,0:T(1,128)}', space=vmem, size = 0x12000, scoped, tag = 'internal scratch']
  %s0 = inlined_call_operand.hbm [shape: f32[4,512], index: 0, kind: input, shape index: {}]
  %s1 = inlined_call_operand.hbm [shape: f32[8,128], index: 1, kind: output, shape index: {0}]
  %s2 = inlined_call_operand.hbm [shape: f32[8,128], index: 2, kind: output, shape index: {1}]
  %3 = xla_tuple %s1, %s2
  %s4 = sld [smem:[#allocation0]]
  $region26: #{tpu_custom_call.1} parent=0
    _
  %s6 = ssub.s32 1, %s4
  %s7 = scalar_select 0, %s6, %s4
  $region1: #{tpu_custom_call.1} parent=0
    #allocation2 [shape = 'u8[8192]{0}', space=vmem, size = 0x2000, scoped, tag = 'input window, operand 0, single buffered']
    #allocation3 [shape = 's32[1]{0}', space=sflag, size = 0x4, scoped, tag = 'scoped memory for tpu_custom_call.1']
    #allocation4 [shape = 's32[1]{0}', space=sflag, size = 0x4, scoped, tag = 'scoped memory for tpu_custom_call.1']
    #allocation5 [shape = 'u8[4096]{0}', space=vmem, size = 0x1000, scoped, tag = 'output window, operand 0, single buffered']
    #allocation6 [shape = 'u8[4096]{0}', space=vmem, size = 0x1000, scoped, tag = 'output window, operand 1, single buffered']
    #allocation7 [shape = 's32[1]{0}', space=sflag, size = 0x4, scoped, tag = 'scoped memory for tpu_custom_call.1']
    %8 = vsyncpa [#allocation3], 0
    %9 = vsyncpa [#allocation4], 0
    %10 = vsyncpa [#allocation7], 0
    // Predicated region
    $region2: #{tpu_custom_call.1} parent=1 // pred_check
      _
    $region3: #{tpu_custom_call.1} parent=1 // pred_check_branch
      %12 = sbr.rel (0) target = $region5
    $region4: #{tpu_custom_call.1} parent=1 // pred_region
      %s14 = ssub.s32 256, 256
      %15 = vsyncadd [#allocation3], %s14
      %s17 = sshll.u32 [#allocation2], 4
      %s18 = int_to_ptr.vmem [resolvable:$true] %s17
      %20 = dma.hbm_to_vmem [thread:$0]  %s0, 256, %s18, [#allocation3]
    $region5: #{tpu_custom_call.1} parent=1 // pred_fallthru
      _
    // Predicated region
    $region6: #{tpu_custom_call.1} parent=1 // pred_check
      _
    $region7: #{tpu_custom_call.1} parent=1 // pred_check_branch
      %22 = sbr.rel (0) target = $region9
    $region8: #{tpu_custom_call.1} parent=1 // pred_region
      %23 = dma.done [#allocation3], 256
    $region9: #{tpu_custom_call.1} parent=1 // pred_fallthru
      _
    %v24 = vld [vmem:[#allocation2] sm:$0xff]
    %v25 = vld [vmem:[#allocation2 + $0x8] sm:$0xff]
    %v28 = vcombine.high %v24, %v24
    %v29 = vcombine.high %v25, %v25
    %vm32 = vcmask 1043456
    %v33 = vsel %vm32, %v24, inf
    %v34 = vrot.slane %v33, 4
    %v35 = vmin.f32 %v33, %v34
    %v36 = vrot.slane %v35, 2
    %v37 = vmin.f32 %v35, %v36
    %v38 = vrot.slane %v37, 1
    %v39 = vmin.f32 %v37, %v38
    %v40 = vsel %vm32, %v28, inf
    %v41 = vrot.slane %v40, 4
    %v42 = vmin.f32 %v40, %v41
    %v43 = vrot.slane %v42, 2
    %v44 = vmin.f32 %v42, %v43
    %v45 = vrot.slane %v44, 1
    %v46 = vmin.f32 %v44, %v45
    %v47 = vsel %vm32, %v25, inf
    %v48 = vrot.slane %v47, 4
    %v49 = vmin.f32 %v47, %v48
    %v50 = vrot.slane %v49, 2
    %v51 = vmin.f32 %v49, %v50
    %v52 = vrot.slane %v51, 1
    %v53 = vmin.f32 %v51, %v52
    %v54 = vsel %vm32, %v29, inf
    %v55 = vrot.slane %v54, 4
    %v56 = vmin.f32 %v54, %v55
    %v57 = vrot.slane %v56, 2
    %v58 = vmin.f32 %v56, %v57
    %v59 = vrot.slane %v58, 1
    %v60 = vmin.f32 %v58, %v59
    %v61 = vsel %vm32, %v24, -inf
    %v62 = vrot.slane %v61, 4
    %v63 = vmax.f32 %v61, %v62
    %v64 = vrot.slane %v63, 2
    %v65 = vmax.f32 %v63, %v64
    %v66 = vrot.slane %v65, 1
    %v67 = vmax.f32 %v65, %v66
    %v68 = vsel %vm32, %v28, -inf
    %v69 = vrot.slane %v68, 4
    %v70 = vmax.f32 %v68, %v69
    %v71 = vrot.slane %v70, 2
    %v72 = vmax.f32 %v70, %v71
    %v73 = vrot.slane %v72, 1
    %v74 = vmax.f32 %v72, %v73
    %v75 = vsel %vm32, %v25, -inf
    %v76 = vrot.slane %v75, 4
    %v77 = vmax.f32 %v75, %v76
    %v78 = vrot.slane %v77, 2
    %v79 = vmax.f32 %v77, %v78
    %v80 = vrot.slane %v79, 1
    %v81 = vmax.f32 %v79, %v80
    %v82 = vsel %vm32, %v29, -inf
    %v83 = vrot.slane %v82, 4
    %v84 = vmax.f32 %v82, %v83
    %v85 = vrot.slane %v84, 2
    %v86 = vmax.f32 %v84, %v85
    %v87 = vrot.slane %v86, 1
    %v88 = vmax.f32 %v86, %v87
    %v89 = vmin.f32 %v39, %v46
    %v90 = vmax.f32 %v67, %v74
    %v91 = vmin.f32 %v89, %v53
    %v92 = vmax.f32 %v90, %v81
    %v93 = vmin.f32 %v91, %v60
    %v94 = vmax.f32 %v92, %v88
    %95 = vst [vmem:[#allocation5] sm:$0xff] %v93
    %96 = vst [vmem:[#allocation6] sm:$0xff] %v94
    // Predicated region
    $region10: #{tpu_custom_call.1} parent=1 // pred_check
      _
    $region11: #{tpu_custom_call.1} parent=1 // pred_check_branch
      %98 = sbr.rel (0) target = $region13
    $region12: #{tpu_custom_call.1} parent=1 // pred_region
      %s100 = ssub.s32 128, 128
      %101 = vsyncadd [#allocation4], %s100
      %s103 = sshll.u32 [#allocation5], 4
      %s104 = int_to_ptr.vmem [resolvable:$true] %s103
      %106 = dma.vmem_to_hbm [thread:$0]  %s104, 128, %s1, [#allocation4]
    $region13: #{tpu_custom_call.1} parent=1 // pred_fallthru
      _
    // Predicated region
    $region14: #{tpu_custom_call.1} parent=1 // pred_check
      _
    $region15: #{tpu_custom_call.1} parent=1 // pred_check_branch
      %108 = sbr.rel (0) target = $region17
    $region16: #{tpu_custom_call.1} parent=1 // pred_region
      %s110 = ssub.s32 128, 128
      %111 = vsyncadd [#allocation7], %s110
      %s113 = sshll.u32 [#allocation6], 4
      %s114 = int_to_ptr.vmem [resolvable:$true] %s113
      %116 = dma.vmem_to_hbm [thread:$0]  %s114, 128, %s2, [#allocation7]
    $region17: #{tpu_custom_call.1} parent=1 // pred_fallthru
      _
    // Predicated region
    $region18: #{tpu_custom_call.1} parent=1 // pred_check
      _
    $region19: #{tpu_custom_call.1} parent=1 // pred_check_branch
      %118 = sbr.rel (0) target = $region21
    $region20: #{tpu_custom_call.1} parent=1 // pred_region
      %119 = dma.done [#allocation4], 128
    $region21: #{tpu_custom_call.1} parent=1 // pred_fallthru
      _
    // Predicated region
    $region22: #{tpu_custom_call.1} parent=1 // pred_check
      _
    $region23: #{tpu_custom_call.1} parent=1 // pred_check_branch
      %121 = sbr.rel (0) target = $region25
    $region24: #{tpu_custom_call.1} parent=1 // pred_region
      %122 = dma.done [#allocation7], 128
    $region25: #{tpu_custom_call.1} parent=1 // pred_fallthru
      _
    %123 = vsyncpa [#allocation3], 1
    %124 = vsyncpa [#allocation4], 1
    %125 = vsyncpa [#allocation7], 1

</llo_original>
